<compile_context>
chip_gen: v7x
topology: tpu7x:2x2x1
jax: 0.10.0
libtpu: 0.0.40
codegen_flags: <defaults>
</compile_context>

<pallas_src>
import jax
import jax.numpy as jnp
from jax import lax
from jax.experimental import pallas as pl
from jax.experimental.pallas import tpu as pltpu


def _round_up(x, m):
    return ((x + m - 1) // m) * m


def _pick_tile(total_pad, cap):
    """Largest multiple of 128 that divides total_pad and is <= cap."""
    best = 128
    t = 256
    while t <= min(cap, total_pad):
        if total_pad % t == 0:
            best = t
        t += 128
    return best


def gcn_kernel(adj_ref, x_ref, dcol_ref, drow_ref, wt_ref, b_ref, o_ref, acc_ref):
    """out = relu( (drow * (adj @ (dcol * x))) @ Wt + b ), tiled over (rows, k)."""
    k = pl.program_id(1)

    @pl.when(k == 0)
    def _():
        acc_ref[...] = jnp.zeros_like(acc_ref)

    # Column-normalize this K-block of x on the VPU (free: MXU/DMA bound loop),
    # then aggregate neighbor features on the MXU in bf16 with f32 accumulation.
    xs = (dcol_ref[...] * x_ref[...]).astype(jnp.bfloat16)
    acc_ref[...] += jnp.dot(adj_ref[...], xs, preferred_element_type=jnp.float32)

    @pl.when(k == pl.num_programs(1) - 1)
    def _():
        agg = drow_ref[...] * acc_ref[...]                # row scale [tm,1]*[tm,F_in]
        out = jnp.dot(agg, wt_ref[...],
                      preferred_element_type=jnp.float32) + b_ref[...]
        o_ref[...] = jnp.maximum(out, 0.0).astype(o_ref.dtype)


def graph_convolution(x, adj, weight, bias, *, max_tile=1024):
    """x: [N, F_in], adj: [N, N], weight: [F_out, F_in] (PyTorch layout), bias: [F_out]."""
    N, F_in = x.shape
    F_out = weight.shape[0]
    f32, bf16 = jnp.float32, jnp.bfloat16

    # --- Padding: N only to a 128 multiple (decoupled from the tile size). ---
    N_pad = _round_up(N, 128)
    F_in_pad = _round_up(F_in, 128)
    F_out_pad = _round_up(F_out, 128)

    # --- Tile selection: divisors of N_pad, as large as possible (<=1024). ---
    tk = _pick_tile(N_pad, max_tile)
    tm = _pick_tile(N_pad, max_tile)
    # Give the "parallel" row axis >= 2 blocks when possible so v7x's two
    # TensorCores both get work (no effect on single-TC v5e/v6e correctness).
    if N_pad // tm < 2 and N_pad >= 256:
        tm = _pick_tile(N_pad, N_pad // 2)

    # --- Degree / inverse-sqrt on the UNPADDED adj (cheap XLA reduce). -------
    adj_f32 = adj.astype(f32)
    deg = jnp.sum(adj_f32, axis=1, keepdims=True)               # [N, 1]
    # deg > 0 guard reproduces the reference's inf->0 handling for non-negative
    # adjacency (the only case the PyTorch module is defined for).
    dinv = jnp.where(deg > 0.0, lax.rsqrt(deg), 0.0)            # [N, 1]

    # --- Pad + cast operands (adj streams as bf16: exact for 0/1 edges). -----
    if N_pad == N:
        adj_p = adj.astype(bf16)                                # no pad copy
        x_pr = x.astype(f32)
        dinv_p = dinv
    else:
        adj_p = jnp.zeros((N_pad, N_pad), bf16).at[:N, :N].set(adj.astype(bf16))
        x_pr = jnp.zeros((N_pad, F_in), f32).at[:N, :].set(x.astype(f32))
        dinv_p = jnp.zeros((N_pad, 1), f32).at[:N, :].set(dinv)
    x_p = (x_pr if F_in_pad == F_in
           else jnp.zeros((N_pad, F_in_pad), f32).at[:, :F_in].set(x_pr))
    wt_p = jnp.zeros((F_in_pad, F_out_pad), f32).at[:F_in, :F_out].set(
        weight.T.astype(f32))
    b_p = jnp.zeros((1, F_out_pad), f32).at[0, :F_out].set(bias.astype(f32))

    grid = (N_pad // tm, N_pad // tk)

    out_p = pl.pallas_call(
        gcn_kernel,
        out_shape=jax.ShapeDtypeStruct((N_pad, F_out_pad), f32),
        grid_spec=pltpu.PrefetchScalarGridSpec(
            num_scalar_prefetch=0,
            grid=grid,
            in_specs=[
                pl.BlockSpec((tm, tk), lambda i, k: (i, k)),            # adj block (bf16)
                pl.BlockSpec((tk, F_in_pad), lambda i, k: (k, 0)),      # x block (f32)
                pl.BlockSpec((tk, 1), lambda i, k: (k, 0)),             # column dinv
                pl.BlockSpec((tm, 1), lambda i, k: (i, 0)),             # row dinv
                pl.BlockSpec((F_in_pad, F_out_pad), lambda i, k: (0, 0)),  # W^T (resident)
                pl.BlockSpec((1, F_out_pad), lambda i, k: (0, 0)),      # bias (resident)
            ],
            out_specs=pl.BlockSpec((tm, F_out_pad), lambda i, k: (i, 0)),
            scratch_shapes=[pltpu.VMEM((tm, F_in_pad), f32)]),
        compiler_params=pltpu.CompilerParams(
            dimension_semantics=("parallel", "arbitrary"),
            vmem_limit_bytes=32 * 1024 * 1024),
    )(adj_p, x_p, dinv_p, dinv_p, wt_p, b_p)

    return out_p[:N, :F_out]


def _reference(x, adj, weight, bias):
    deg = jnp.sum(adj, axis=1)
    dinv = jnp.power(deg, -0.5)
    dinv = jnp.where(jnp.isinf(dinv), 0.0, dinv)
    norm_adj = adj * dinv[:, None] * dinv[None, :]
    h = norm_adj @ x
    h = h @ weight.T + bias
    return jnp.maximum(h, 0.0)


def _make_case(key, N, F_in, F_out, edge_thresh):
    kx, ka, kw, kb = jax.random.split(key, 4)
    x = jax.random.normal(kx, (N, F_in), dtype=jnp.float32)
    a = (jax.random.uniform(ka, (N, N)) > edge_thresh).astype(jnp.float32)
    adj = jnp.maximum(a, a.T)                 # symmetric 0/1; some rows may be empty
    bound = 1.0 / (F_in ** 0.5)
    weight = jax.random.uniform(kw, (F_out, F_in), minval=-bound, maxval=bound,
                                dtype=jnp.float32)
    bias = jax.random.uniform(kb, (F_out,), minval=-bound, maxval=bound,
                              dtype=jnp.float32)
    return x, adj, weight, bias


if __name__ == "__main__":
    gcn = jax.jit(graph_convolution, static_argnames=("max_tile",))

    # Case 1: small shapes matching the module (N=16 nodes, 32 -> 32 features).
    key = jax.random.PRNGKey(0)
    x, adj, weight, bias = _make_case(key, N=16, F_in=32, F_out=32,
                                      edge_thresh=0.7)
    out = jax.block_until_ready(gcn(x, adj, weight, bias))
    ref = _reference(x, adj, weight, bias)
    assert out.shape == (16, 32)
    assert jnp.allclose(out, ref, atol=2e-2, rtol=2e-2)

    # Case 2: forces a multi-block (3, 3) grid (accumulator + parallel row path)
    # and non-128-multiple N / feature dims (padding + slicing paths).
    key2 = jax.random.PRNGKey(1)
    x2, adj2, w2, b2 = _make_case(key2, N=300, F_in=48, F_out=24,
                                  edge_thresh=0.9)
    out2 = jax.block_until_ready(gcn(x2, adj2, w2, b2, max_tile=128))
    ref2 = _reference(x2, adj2, w2, b2)
    assert out2.shape == (300, 24)
    assert jnp.allclose(out2, ref2, atol=2e-2, rtol=2e-2)

    print("KERNEL_OK")
</pallas_src>

<mosaic_0001>
module attributes {stable_mosaic.version = 11 : i64} {
  func.func @gcn_kernel(%arg0: i32, %arg1: i32, %arg2: memref<128x128xbf16, #tpu.memory_space<vmem>>, %arg3: memref<128x128xf32, #tpu.memory_space<vmem>>, %arg4: memref<128x1xf32, #tpu.memory_space<vmem>>, %arg5: memref<128x1xf32, #tpu.memory_space<vmem>>, %arg6: memref<128x128xf32, #tpu.memory_space<vmem>>, %arg7: memref<1x128xf32, #tpu.memory_space<vmem>>, %arg8: memref<128x128xf32, #tpu.memory_space<vmem>>, %arg9: memref<128x128xf32, #tpu.memory_space<vmem>>) attributes {dimension_semantics = [#tpu.dimension_semantics<parallel>, #tpu.dimension_semantics<arbitrary>], iteration_bounds = array<i64: 1, 1>, scalar_prefetch = 0 : i64, scratch_operands = 1 : i64, tpu.core_type = #tpu.core_type<tc>, window_params = [{transform_indices = @transform_0, window_bounds = array<i64: 128, 128>}, {transform_indices = @transform_1, window_bounds = array<i64: 128, 128>}, {transform_indices = @transform_2, window_bounds = array<i64: 128, 1>}, {transform_indices = @transform_3, window_bounds = array<i64: 128, 1>}, {pipeline_mode = #tpu.pipeline_mode<synchronous>, transform_indices = @transform_4, window_bounds = array<i64: 128, 128>}, {pipeline_mode = #tpu.pipeline_mode<synchronous>, transform_indices = @transform_5, window_bounds = array<i64: 1, 128>}, {transform_indices = @transform_6, window_bounds = array<i64: 128, 128>}]} {
    %c0_i32 = arith.constant 0 : i32
    %0 = arith.cmpi eq, %arg1, %c0_i32 : i32
    %1 = arith.extui %0 : i1 to i32
    %c0_i32_0 = arith.constant 0 : i32
    %2 = arith.cmpi ne, %1, %c0_i32_0 : i32
    scf.if %2 {
      %cst_12 = arith.constant 0.000000e+00 : f32
      %16 = vector.broadcast %cst_12 : f32 to vector<128x128xf32>
      %c0_13 = arith.constant 0 : index
      %c0_14 = arith.constant 0 : index
      %17 = vector.load %arg9[%c0_13, %c0_14] : memref<128x128xf32, #tpu.memory_space<vmem>>, vector<128x128xf32>
      tpu.vector_store %arg9[%c0_13, %c0_14], %16 {strides = array<i32>} : memref<128x128xf32, #tpu.memory_space<vmem>>, vector<128x128xf32>,
    } else {
    }
    %c0 = arith.constant 0 : index
    %c0_1 = arith.constant 0 : index
    %3 = vector.load %arg4[%c0, %c0_1] : memref<128x1xf32, #tpu.memory_space<vmem>>, vector<128x1xf32>
    %c0_2 = arith.constant 0 : index
    %c0_3 = arith.constant 0 : index
    %4 = vector.load %arg3[%c0_2, %c0_3] : memref<128x128xf32, #tpu.memory_space<vmem>>, vector<128x128xf32>
    %5 = vector.broadcast %3 : vector<128x1xf32> to vector<128x128xf32>
    %6 = arith.mulf %5, %4 : vector<128x128xf32>
    %7 = arith.truncf %6 : vector<128x128xf32> to vector<128x128xbf16>
    %c0_4 = arith.constant 0 : index
    %c0_5 = arith.constant 0 : index
    %8 = vector.load %arg9[%c0_4, %c0_5] : memref<128x128xf32, #tpu.memory_space<vmem>>, vector<128x128xf32>
    %c0_6 = arith.constant 0 : index
    %c0_7 = arith.constant 0 : index
    %9 = vector.load %arg2[%c0_6, %c0_7] : memref<128x128xbf16, #tpu.memory_space<vmem>>, vector<128x128xbf16>
    %cst = arith.constant dense<0.000000e+00> : vector<128x128xf32>
    %10 = tpu.matmul %9, %7, %cst {dimension_numbers = #tpu.dot_dimension_numbers<[1], [0], [0], [1], [0, 0, 1, 1], [], []>} : vector<128x128xbf16>, vector<128x128xbf16>, vector<128x128xf32> -> vector<128x128xf32>
    %11 = arith.addf %8, %10 : vector<128x128xf32>
    %c0_8 = arith.constant 0 : index
    %c0_9 = arith.constant 0 : index
    %12 = vector.load %arg9[%c0_8, %c0_9] : memref<128x128xf32, #tpu.memory_space<vmem>>, vector<128x128xf32>
    tpu.vector_store %arg9[%c0_8, %c0_9], %11 {strides = array<i32>} : memref<128x128xf32, #tpu.memory_space<vmem>>, vector<128x128xf32>,
    %c0_i32_10 = arith.constant 0 : i32
    %13 = arith.cmpi eq, %arg1, %c0_i32_10 : i32
    %14 = arith.extui %13 : i1 to i32
    %c0_i32_11 = arith.constant 0 : i32
    %15 = arith.cmpi ne, %14, %c0_i32_11 : i32
    scf.if %15 {
      %c0_12 = arith.constant 0 : index
      %c0_13 = arith.constant 0 : index
      %16 = vector.load %arg5[%c0_12, %c0_13] : memref<128x1xf32, #tpu.memory_space<vmem>>, vector<128x1xf32>
      %c0_14 = arith.constant 0 : index
      %c0_15 = arith.constant 0 : index
      %17 = vector.load %arg9[%c0_14, %c0_15] : memref<128x128xf32, #tpu.memory_space<vmem>>, vector<128x128xf32>
      %18 = vector.broadcast %16 : vector<128x1xf32> to vector<128x128xf32>
      %19 = arith.mulf %18, %17 : vector<128x128xf32>
      %c0_16 = arith.constant 0 : index
      %c0_17 = arith.constant 0 : index
      %20 = vector.load %arg6[%c0_16, %c0_17] : memref<128x128xf32, #tpu.memory_space<vmem>>, vector<128x128xf32>
      %cst_18 = arith.constant dense<0.000000e+00> : vector<128x128xf32>
      %21 = tpu.matmul %19, %20, %cst_18 {dimension_numbers = #tpu.dot_dimension_numbers<[1], [0], [0], [1], [0, 0, 1, 1], [], []>} : vector<128x128xf32>, vector<128x128xf32>, vector<128x128xf32> -> vector<128x128xf32>
      %c0_19 = arith.constant 0 : index
      %c0_20 = arith.constant 0 : index
      %22 = vector.load %arg7[%c0_19, %c0_20] : memref<1x128xf32, #tpu.memory_space<vmem>>, vector<1x128xf32>
      %23 = vector.broadcast %22 : vector<1x128xf32> to vector<128x128xf32>
      %24 = arith.addf %21, %23 : vector<128x128xf32>
      %cst_21 = arith.constant 0.000000e+00 : f32
      %25 = vector.broadcast %cst_21 : f32 to vector<128x128xf32>
      %26 = arith.maximumf %24, %25 : vector<128x128xf32>
      %c0_22 = arith.constant 0 : index
      %c0_23 = arith.constant 0 : index
      %27 = vector.load %arg8[%c0_22, %c0_23] : memref<128x128xf32, #tpu.memory_space<vmem>>, vector<128x128xf32>
      tpu.vector_store %arg8[%c0_22, %c0_23], %26 {strides = array<i32>} : memref<128x128xf32, #tpu.memory_space<vmem>>, vector<128x128xf32>,
    } else {
    }
    return
  }
  func.func @transform_0(%arg0: i32, %arg1: i32) -> (i32, i32) {
    %c0_i32 = arith.constant 0 : i32
    return %arg0, %arg1 : i32, i32
  }
  func.func @transform_1(%arg0: i32, %arg1: i32) -> (i32, i32) {
    %c0_i32 = arith.constant 0 : i32
    %c0_i32_0 = arith.constant 0 : i32
    return %arg1, %c0_i32 : i32, i32
  }
  func.func @transform_2(%arg0: i32, %arg1: i32) -> (i32, i32) {
    %c0_i32 = arith.constant 0 : i32
    %c0_i32_0 = arith.constant 0 : i32
    return %arg1, %c0_i32 : i32, i32
  }
  func.func @transform_3(%arg0: i32, %arg1: i32) -> (i32, i32) {
    %c0_i32 = arith.constant 0 : i32
    %c0_i32_0 = arith.constant 0 : i32
    return %arg0, %c0_i32 : i32, i32
  }
  func.func @transform_4(%arg0: i32, %arg1: i32) -> (i32, i32) {
    %c0_i32 = arith.constant 0 : i32
    %c0_i32_0 = arith.constant 0 : i32
    %c0_i32_1 = arith.constant 0 : i32
    return %c0_i32, %c0_i32_0 : i32, i32
  }
  func.func @transform_5(%arg0: i32, %arg1: i32) -> (i32, i32) {
    %c0_i32 = arith.constant 0 : i32
    %c0_i32_0 = arith.constant 0 : i32
    %c0_i32_1 = arith.constant 0 : i32
    return %c0_i32, %c0_i32_0 : i32, i32
  }
  func.func @transform_6(%arg0: i32, %arg1: i32) -> (i32, i32) {
    %c0_i32 = arith.constant 0 : i32
    %c0_i32_0 = arith.constant 0 : i32
    return %arg0, %c0_i32 : i32, i32
  }
}

</mosaic_0001>

<llo_original>
// kernel: graph_convolution.1
$region0: #{graph_convolution.1}
  #allocation0 [shape = 'u32[]', space=smem, size = 0x4, offset = 0x4, fixed_abs, tag = 'smem constant byte address 0x4 - core index']
  #allocation1 [shape = 'u32[144,128]{1,0:T(1,128)}', space=vmem, size = 0x12000, scoped, tag = 'internal scratch']
  #allocation2 [shape = 'f32[128,128]{1,0:T(8,128)}', space=vmem, size = 0x10000, scoped, tag = 'scratch operand']
  %s0 = inlined_call_operand.vmem [shape: bf16[128,128], index: 0, kind: input, shape index: {}]
  %s1 = inlined_call_operand.vmem [shape: f32[128,128], index: 1, kind: input, shape index: {}]
  %s2 = inlined_call_operand.vmem [shape: f32[128,1], index: 2, kind: input, shape index: {}, may-alias: {2,3}]
  %s3 = inlined_call_operand.vmem [shape: f32[128,1], index: 3, kind: input, shape index: {}, may-alias: {2,3}]
  %s4 = inlined_call_operand.vmem [shape: f32[128,128], index: 4, kind: input, shape index: {}]
  %s5 = inlined_call_operand.vmem [shape: f32[1,128], index: 5, kind: input, shape index: {}]
  %s6 = inlined_call_operand.vmem [shape: f32[128,128], index: 6, kind: output, shape index: {}]
  %s7 = sld [smem:[#allocation0]]
  $region42: #{graph_convolution.1} parent=0
    _
  %s9 = ssub.s32 1, %s7
  %s10 = scalar_select 0, %s9, %s7
  // Predicated region
  $region2: #{graph_convolution.1} parent=0 // pred_check
    _
  $region3: #{graph_convolution.1} parent=0 // pred_check_branch
    %12 = sbr.rel (0) target = $region5
  $region4: #{graph_convolution.1} parent=0 // pred_region
    _
  $region5: #{graph_convolution.1} parent=0 // pred_fallthru
    _
  // Predicated region
  $region6: #{graph_convolution.1} parent=0 // pred_check
    _
  $region7: #{graph_convolution.1} parent=0 // pred_check_branch
    %14 = sbr.rel (0) target = $region9
  $region8: #{graph_convolution.1} parent=0 // pred_region
    _
  $region9: #{graph_convolution.1} parent=0 // pred_fallthru
    _
  // Predicated region
  $region10: #{graph_convolution.1} parent=0 // pred_check
    _
  $region11: #{graph_convolution.1} parent=0 // pred_check_branch
    %16 = sbr.rel (0) target = $region13
  $region12: #{graph_convolution.1} parent=0 // pred_region
    _
  $region13: #{graph_convolution.1} parent=0 // pred_fallthru
    _
  // Predicated region
  $region14: #{graph_convolution.1} parent=0 // pred_check
    _
  $region15: #{graph_convolution.1} parent=0 // pred_check_branch
    %18 = sbr.rel (0) target = $region17
  $region16: #{graph_convolution.1} parent=0 // pred_region
    _
  $region17: #{graph_convolution.1} parent=0 // pred_fallthru
    _
  // Predicated region
  $region18: #{graph_convolution.1} parent=0 // pred_check
    _
  $region19: #{graph_convolution.1} parent=0 // pred_check_branch
    %20 = sbr.rel (0) target = $region21
  $region20: #{graph_convolution.1} parent=0 // pred_region
    _
  $region21: #{graph_convolution.1} parent=0 // pred_fallthru
    _
  // Predicated region
  $region22: #{graph_convolution.1} parent=0 // pred_check
    _
  $region23: #{graph_convolution.1} parent=0 // pred_check_branch
    %22 = sbr.rel (0) target = $region25
  $region24: #{graph_convolution.1} parent=0 // pred_region
    _
  $region25: #{graph_convolution.1} parent=0 // pred_fallthru
    _
  %p24 = scmp.eq.s32.totalorder 0, 0
  // Predicated region
  $region26: #{graph_convolution.1} parent=0 // pred_check
    %p25 = pneg %p24
  $region27: #{graph_convolution.1} parent=0 // pred_check_branch
    %27 = sbr.rel (%p25) target = $region29
  $region28: #{graph_convolution.1} parent=0 // pred_region
    %28 = vst [vmem:[#allocation2] sm:$0xff] 0.0
    %29 = vst [vmem:[#allocation2 + $0x8] sm:$0xff] 0.0
    %30 = vst [vmem:[#allocation2 + $0x10] sm:$0xff] 0.0
    %31 = vst [vmem:[#allocation2 + $0x18] sm:$0xff] 0.0
    %32 = vst [vmem:[#allocation2 + $0x20] sm:$0xff] 0.0
    %33 = vst [vmem:[#allocation2 + $0x28] sm:$0xff] 0.0
    %34 = vst [vmem:[#allocation2 + $0x30] sm:$0xff] 0.0
    %35 = vst [vmem:[#allocation2 + $0x38] sm:$0xff] 0.0
    %36 = vst [vmem:[#allocation2 + $0x40] sm:$0xff] 0.0
    %37 = vst [vmem:[#allocation2 + $0x48] sm:$0xff] 0.0
    %38 = vst [vmem:[#allocation2 + $0x50] sm:$0xff] 0.0
    %39 = vst [vmem:[#allocation2 + $0x58] sm:$0xff] 0.0
    %40 = vst [vmem:[#allocation2 + $0x60] sm:$0xff] 0.0
    %41 = vst [vmem:[#allocation2 + $0x68] sm:$0xff] 0.0
    %42 = vst [vmem:[#allocation2 + $0x70] sm:$0xff] 0.0
    %43 = vst [vmem:[#allocation2 + $0x78] sm:$0xff] 0.0
  $region29: #{graph_convolution.1} parent=0 // pred_fallthru
    _
  %v44 = vld [vmem:[%s2] sm:$0xff]
  %v45 = vld [vmem:[%s2 + $0x8] sm:$0xff]
  %v46 = vld [vmem:[%s2 + $0x10] sm:$0xff]
  %v47 = vld [vmem:[%s2 + $0x18] sm:$0xff]
  %v48 = vld [vmem:[%s2 + $0x20] sm:$0xff]
  %v49 = vld [vmem:[%s2 + $0x28] sm:$0xff]
  %v50 = vld [vmem:[%s2 + $0x30] sm:$0xff]
  %v51 = vld [vmem:[%s2 + $0x38] sm:$0xff]
  %v52 = vld [vmem:[%s2 + $0x40] sm:$0xff]
  %v53 = vld [vmem:[%s2 + $0x48] sm:$0xff]
  %v54 = vld [vmem:[%s2 + $0x50] sm:$0xff]
  %v55 = vld [vmem:[%s2 + $0x58] sm:$0xff]
  %v56 = vld [vmem:[%s2 + $0x60] sm:$0xff]
  %v57 = vld [vmem:[%s2 + $0x68] sm:$0xff]
  %v58 = vld [vmem:[%s2 + $0x70] sm:$0xff]
  %v59 = vld [vmem:[%s2 + $0x78] sm:$0xff]
  %v60 = vld [vmem:[%s1] sm:$0xff]
  %v61 = vld [vmem:[%s1 + $0x8] sm:$0xff]
  %v62 = vld [vmem:[%s1 + $0x10] sm:$0xff]
  %v63 = vld [vmem:[%s1 + $0x18] sm:$0xff]
  %v64 = vld [vmem:[%s1 + $0x20] sm:$0xff]
  %v65 = vld [vmem:[%s1 + $0x28] sm:$0xff]
  %v66 = vld [vmem:[%s1 + $0x30] sm:$0xff]
  %v67 = vld [vmem:[%s1 + $0x38] sm:$0xff]
  %v68 = vld [vmem:[%s1 + $0x40] sm:$0xff]
  %v69 = vld [vmem:[%s1 + $0x48] sm:$0xff]
  %v70 = vld [vmem:[%s1 + $0x50] sm:$0xff]
  %v71 = vld [vmem:[%s1 + $0x58] sm:$0xff]
  %v72 = vld [vmem:[%s1 + $0x60] sm:$0xff]
  %v73 = vld [vmem:[%s1 + $0x68] sm:$0xff]
  %v74 = vld [vmem:[%s1 + $0x70] sm:$0xff]
  %v75 = vld [vmem:[%s1 + $0x78] sm:$0xff]
  %77 = vset.pattern.permute.xlu0 0
  %78 = vperm.xlu0 %77, %v44
  %v79 = vpop.permute.xlu0 %78
  %82 = vset.pattern.permute.xlu0 0
  %83 = vperm.xlu0 %82, %v45
  %v84 = vpop.permute.xlu0 %83
  %87 = vset.pattern.permute.xlu0 0
  %88 = vperm.xlu0 %87, %v46
  %v89 = vpop.permute.xlu0 %88
  %92 = vset.pattern.permute.xlu0 0
  %93 = vperm.xlu0 %92, %v47
  %v94 = vpop.permute.xlu0 %93
  %97 = vset.pattern.permute.xlu0 0
  %98 = vperm.xlu0 %97, %v48
  %v99 = vpop.permute.xlu0 %98
  %102 = vset.pattern.permute.xlu0 0
  %103 = vperm.xlu0 %102, %v49
  %v104 = vpop.permute.xlu0 %103
  %107 = vset.pattern.permute.xlu0 0
  %108 = vperm.xlu0 %107, %v50
  %v109 = vpop.permute.xlu0 %108
  %112 = vset.pattern.permute.xlu0 0
  %113 = vperm.xlu0 %112, %v51
  %v114 = vpop.permute.xlu0 %113
  %117 = vset.pattern.permute.xlu0 0
  %118 = vperm.xlu0 %117, %v52
  %v119 = vpop.permute.xlu0 %118
  %122 = vset.pattern.permute.xlu0 0
  %123 = vperm.xlu0 %122, %v53
  %v124 = vpop.permute.xlu0 %123
  %127 = vset.pattern.permute.xlu0 0
  %128 = vperm.xlu0 %127, %v54
  %v129 = vpop.permute.xlu0 %128
  %132 = vset.pattern.permute.xlu0 0
  %133 = vperm.xlu0 %132, %v55
  %v134 = vpop.permute.xlu0 %133
  %137 = vset.pattern.permute.xlu0 0
  %138 = vperm.xlu0 %137, %v56
  %v139 = vpop.permute.xlu0 %138
  %142 = vset.pattern.permute.xlu0 0
  %143 = vperm.xlu0 %142, %v57
  %v144 = vpop.permute.xlu0 %143
  %147 = vset.pattern.permute.xlu0 0
  %148 = vperm.xlu0 %147, %v58
  %v149 = vpop.permute.xlu0 %148
  %152 = vset.pattern.permute.xlu0 0
  %153 = vperm.xlu0 %152, %v59
  %v154 = vpop.permute.xlu0 %153
  %v156 = vmul.f32 %v79, %v60
  %v157 = vmul.f32 %v84, %v61
  %v158 = vmul.f32 %v89, %v62
  %v159 = vmul.f32 %v94, %v63
  %v160 = vmul.f32 %v99, %v64
  %v161 = vmul.f32 %v104, %v65
  %v162 = vmul.f32 %v109, %v66
  %v163 = vmul.f32 %v114, %v67
  %v164 = vmul.f32 %v119, %v68
  %v165 = vmul.f32 %v124, %v69
  %v166 = vmul.f32 %v129, %v70
  %v167 = vmul.f32 %v134, %v71
  %v168 = vmul.f32 %v139, %v72
  %v169 = vmul.f32 %v144, %v73
  %v170 = vmul.f32 %v149, %v74
  %v171 = vmul.f32 %v154, %v75
  %v172 = vpack.c.bf16 %v157, %v156
  %v173 = vpack.c.bf16 %v159, %v158
  %v174 = vpack.c.bf16 %v161, %v160
  %v175 = vpack.c.bf16 %v163, %v162
  %v176 = vpack.c.bf16 %v165, %v164
  %v177 = vpack.c.bf16 %v167, %v166
  %v178 = vpack.c.bf16 %v169, %v168
  %v179 = vpack.c.bf16 %v171, %v170
  %v180 = vld [vmem:[#allocation2] sm:$0xff]
  %v181 = vld [vmem:[#allocation2 + $0x8] sm:$0xff]
  %v182 = vld [vmem:[#allocation2 + $0x10] sm:$0xff]
  %v183 = vld [vmem:[#allocation2 + $0x18] sm:$0xff]
  %v184 = vld [vmem:[#allocation2 + $0x20] sm:$0xff]
  %v185 = vld [vmem:[#allocation2 + $0x28] sm:$0xff]
  %v186 = vld [vmem:[#allocation2 + $0x30] sm:$0xff]
  %v187 = vld [vmem:[#allocation2 + $0x38] sm:$0xff]
  %v188 = vld [vmem:[#allocation2 + $0x40] sm:$0xff]
  %v189 = vld [vmem:[#allocation2 + $0x48] sm:$0xff]
  %v190 = vld [vmem:[#allocation2 + $0x50] sm:$0xff]
  %v191 = vld [vmem:[#allocation2 + $0x58] sm:$0xff]
  %v192 = vld [vmem:[#allocation2 + $0x60] sm:$0xff]
  %v193 = vld [vmem:[#allocation2 + $0x68] sm:$0xff]
  %v194 = vld [vmem:[#allocation2 + $0x70] sm:$0xff]
  %v195 = vld [vmem:[#allocation2 + $0x78] sm:$0xff]
  %v196 = vld [vmem:[%s0] sm:$0xf]
  %v197 = vld [vmem:[%s0 + $0x4] sm:$0xf]
  %v198 = vld [vmem:[%s0 + $0x8] sm:$0xf]
  %v199 = vld [vmem:[%s0 + $0xc] sm:$0xf]
  %v200 = vld [vmem:[%s0 + $0x10] sm:$0xf]
  %v201 = vld [vmem:[%s0 + $0x14] sm:$0xf]
  %v202 = vld [vmem:[%s0 + $0x18] sm:$0xf]
  %v203 = vld [vmem:[%s0 + $0x1c] sm:$0xf]
  %v204 = vld [vmem:[%s0 + $0x20] sm:$0xf]
  %v205 = vld [vmem:[%s0 + $0x24] sm:$0xf]
  %v206 = vld [vmem:[%s0 + $0x28] sm:$0xf]
  %v207 = vld [vmem:[%s0 + $0x2c] sm:$0xf]
  %v208 = vld [vmem:[%s0 + $0x30] sm:$0xf]
  %v209 = vld [vmem:[%s0 + $0x34] sm:$0xf]
  %v210 = vld [vmem:[%s0 + $0x38] sm:$0xf]
  %v211 = vld [vmem:[%s0 + $0x3c] sm:$0xf]
  %v228 = vunpack.c.l.b16 %v196
  %v229 = vunpack.c.l.b16 %v197
  %v230 = vunpack.c.l.b16 %v198
  %v231 = vunpack.c.l.b16 %v199
  %v232 = vunpack.c.l.b16 %v200
  %v233 = vunpack.c.l.b16 %v201
  %v234 = vunpack.c.l.b16 %v202
  %v235 = vunpack.c.l.b16 %v203
  %v236 = vunpack.c.l.b16 %v204
  %v237 = vunpack.c.l.b16 %v205
  %v238 = vunpack.c.l.b16 %v206
  %v239 = vunpack.c.l.b16 %v207
  %v240 = vunpack.c.l.b16 %v208
  %v241 = vunpack.c.l.b16 %v209
  %v242 = vunpack.c.l.b16 %v210
  %v243 = vunpack.c.l.b16 %v211
  %v244 = vpack.c.b16 %v229, %v228
  %v245 = vpack.c.b16 %v231, %v230
  %v246 = vpack.c.b16 %v233, %v232
  %v247 = vpack.c.b16 %v235, %v234
  %v248 = vpack.c.b16 %v237, %v236
  %v249 = vpack.c.b16 %v239, %v238
  %v250 = vpack.c.b16 %v241, %v240
  %v251 = vpack.c.b16 %v243, %v242
  %260 = vmatprep.subr.bf16.mxu0 0
  %261 = vmatpush1.bf16.msra.mxu0 %v172
  %262 = vmatprep.subr.bf16.mxu0 0
  %263 = vmatpush1.bf16.msra.mxu0 %v173
  %264 = vmatprep.subr.bf16.mxu0 0
  %265 = vmatpush1.bf16.msra.mxu0 %v174
  %266 = vmatprep.subr.bf16.mxu0 0
  %267 = vmatpush1.bf16.msra.mxu0 %v175
  %268 = vmatprep.subr.bf16.mxu0 0
  %269 = vmatpush1.bf16.msra.mxu0 %v176
  %270 = vmatprep.subr.bf16.mxu0 0
  %271 = vmatpush1.bf16.msra.mxu0 %v177
  %272 = vmatprep.subr.bf16.mxu0 0
  %273 = vmatpush1.bf16.msra.mxu0 %v178
  %274 = vmatprep.subr.bf16.mxu0 0
  %275 = vmatpush1.bf16.msra.mxu0 %v179
  %276 = vmatprep.subr.bf16.mxu0 0
  %277 = vmatpush1.bf16.msra.mxu0 0
  %278 = vmatprep.subr.bf16.mxu0 0
  %279 = vmatpush1.bf16.msra.mxu0 0
  %280 = vmatprep.subr.bf16.mxu0 0
  %281 = vmatpush1.bf16.msra.mxu0 0
  %282 = vmatprep.subr.bf16.mxu0 0
  %283 = vmatpush1.bf16.msra.mxu0 0
  %284 = vmatprep.subr.bf16.mxu0 0
  %285 = vmatpush1.bf16.msra.mxu0 0
  %286 = vmatprep.subr.bf16.mxu0 0
  %287 = vmatpush1.bf16.msra.mxu0 0
  %288 = vmatprep.subr.bf16.mxu0 0
  %289 = vmatpush1.bf16.msra.mxu0 0
  %290 = vmatprep.subr.bf16.mxu0 0
  %291 = vmatpush1.bf16.msra.mxu0 0
  %292 = vmatprep.mubr.bf16.mxu0 0
  %293 = vmatmul.mubr.bf16.gmra.mrb[0].mxu0 %v244
  %v294 = vpop.f32.mrb[0].mxu0
  %v295 = vadd.f32 0.0, %v294
  %v296 = vpop.f32.mrb[0].mxu0
  %v297 = vpop.f32.mrb[0].mxu0
  %v298 = vadd.f32 0.0, %v297
  %v299 = vpop.f32.mrb[0].mxu0
  %300 = vmatprep.mubr.bf16.mxu0 0
  %301 = vmatmul.mubr.bf16.gmra.mrb[0].mxu0 %v245
  %v302 = vpop.f32.mrb[0].mxu0
  %v303 = vadd.f32 0.0, %v302
  %v304 = vpop.f32.mrb[0].mxu0
  %v305 = vpop.f32.mrb[0].mxu0
  %v306 = vadd.f32 0.0, %v305
  %v307 = vpop.f32.mrb[0].mxu0
  %308 = vmatprep.mubr.bf16.mxu0 0
  %309 = vmatmul.mubr.bf16.gmra.mrb[0].mxu0 %v246
  %v310 = vpop.f32.mrb[0].mxu0
  %v311 = vadd.f32 0.0, %v310
  %v312 = vpop.f32.mrb[0].mxu0
  %v313 = vpop.f32.mrb[0].mxu0
  %v314 = vadd.f32 0.0, %v313
  %v315 = vpop.f32.mrb[0].mxu0
  %316 = vmatprep.mubr.bf16.mxu0 0
  %317 = vmatmul.mubr.bf16.gmra.mrb[0].mxu0 %v247
  %v318 = vpop.f32.mrb[0].mxu0
  %v319 = vadd.f32 0.0, %v318
  %v320 = vpop.f32.mrb[0].mxu0
  %v321 = vpop.f32.mrb[0].mxu0
  %v322 = vadd.f32 0.0, %v321
  %v323 = vpop.f32.mrb[0].mxu0
  %324 = vmatprep.mubr.bf16.mxu0 0
  %325 = vmatmul.mubr.bf16.gmra.mrb[0].mxu0 %v248
  %v326 = vpop.f32.mrb[0].mxu0
  %v327 = vadd.f32 0.0, %v326
  %v328 = vpop.f32.mrb[0].mxu0
  %v329 = vpop.f32.mrb[0].mxu0
  %v330 = vadd.f32 0.0, %v329
  %v331 = vpop.f32.mrb[0].mxu0
  %332 = vmatprep.mubr.bf16.mxu0 0
  %333 = vmatmul.mubr.bf16.gmra.mrb[0].mxu0 %v249
  %v334 = vpop.f32.mrb[0].mxu0
  %v335 = vadd.f32 0.0, %v334
  %v336 = vpop.f32.mrb[0].mxu0
  %v337 = vpop.f32.mrb[0].mxu0
  %v338 = vadd.f32 0.0, %v337
  %v339 = vpop.f32.mrb[0].mxu0
  %340 = vmatprep.mubr.bf16.mxu0 0
  %341 = vmatmul.mubr.bf16.gmra.mrb[0].mxu0 %v250
  %v342 = vpop.f32.mrb[0].mxu0
  %v343 = vadd.f32 0.0, %v342
  %v344 = vpop.f32.mrb[0].mxu0
  %v345 = vpop.f32.mrb[0].mxu0
  %v346 = vadd.f32 0.0, %v345
  %v347 = vpop.f32.mrb[0].mxu0
  %348 = vmatprep.mubr.bf16.mxu0 0
  %349 = vmatmul.mubr.bf16.gmra.mrb[0].mxu0 %v251
  %v350 = vpop.f32.mrb[0].mxu0
  %v351 = vadd.f32 0.0, %v350
  %v352 = vpop.f32.mrb[0].mxu0
  %v353 = vpop.f32.mrb[0].mxu0
  %v354 = vadd.f32 0.0, %v353
  %v355 = vpop.f32.mrb[0].mxu0
  %356 = vdwg.mxu0
  %v357 = vadd.f32 %v180, %v295
  %v358 = vadd.f32 %v181, %v298
  %v359 = vadd.f32 %v182, %v303
  %v360 = vadd.f32 %v183, %v306
  %v361 = vadd.f32 %v184, %v311
  %v362 = vadd.f32 %v185, %v314
  %v363 = vadd.f32 %v186, %v319
  %v364 = vadd.f32 %v187, %v322
  %v365 = vadd.f32 %v188, %v327
  %v366 = vadd.f32 %v189, %v330
  %v367 = vadd.f32 %v190, %v335
  %v368 = vadd.f32 %v191, %v338
  %v369 = vadd.f32 %v192, %v343
  %v370 = vadd.f32 %v193, %v346
  %v371 = vadd.f32 %v194, %v351
  %v372 = vadd.f32 %v195, %v354
  %373 = vst [vmem:[#allocation2] sm:$0xff] %v357
  %374 = vst [vmem:[#allocation2 + $0x8] sm:$0xff] %v358
  %375 = vst [vmem:[#allocation2 + $0x10] sm:$0xff] %v359
  %376 = vst [vmem:[#allocation2 + $0x18] sm:$0xff] %v360
  %377 = vst [vmem:[#allocation2 + $0x20] sm:$0xff] %v361
  %378 = vst [vmem:[#allocation2 + $0x28] sm:$0xff] %v362
  %379 = vst [vmem:[#allocation2 + $0x30] sm:$0xff] %v363
  %380 = vst [vmem:[#allocation2 + $0x38] sm:$0xff] %v364
  %381 = vst [vmem:[#allocation2 + $0x40] sm:$0xff] %v365
  %382 = vst [vmem:[#allocation2 + $0x48] sm:$0xff] %v366
  %383 = vst [vmem:[#allocation2 + $0x50] sm:$0xff] %v367
  %384 = vst [vmem:[#allocation2 + $0x58] sm:$0xff] %v368
  %385 = vst [vmem:[#allocation2 + $0x60] sm:$0xff] %v369
  %386 = vst [vmem:[#allocation2 + $0x68] sm:$0xff] %v370
  %387 = vst [vmem:[#allocation2 + $0x70] sm:$0xff] %v371
  %388 = vst [vmem:[#allocation2 + $0x78] sm:$0xff] %v372
  // Predicated region
  $region30: #{graph_convolution.1} parent=0 // pred_check
    %p389 = pneg %p24
  $region31: #{graph_convolution.1} parent=0 // pred_check_branch
    %391 = sbr.rel (%p389) target = $region33
  $region32: #{graph_convolution.1} parent=0 // pred_region
    %v392 = vld [vmem:[%s3] sm:$0xff]
    %v393 = vld [vmem:[%s3 + $0x8] sm:$0xff]
    %v394 = vld [vmem:[%s3 + $0x10] sm:$0xff]
    %v395 = vld [vmem:[%s3 + $0x18] sm:$0xff]
    %v396 = vld [vmem:[%s3 + $0x20] sm:$0xff]
    %v397 = vld [vmem:[%s3 + $0x28] sm:$0xff]
    %v398 = vld [vmem:[%s3 + $0x30] sm:$0xff]
    %v399 = vld [vmem:[%s3 + $0x38] sm:$0xff]
    %v400 = vld [vmem:[%s3 + $0x40] sm:$0xff]
    %v401 = vld [vmem:[%s3 + $0x48] sm:$0xff]
    %v402 = vld [vmem:[%s3 + $0x50] sm:$0xff]
    %v403 = vld [vmem:[%s3 + $0x58] sm:$0xff]
    %v404 = vld [vmem:[%s3 + $0x60] sm:$0xff]
    %v405 = vld [vmem:[%s3 + $0x68] sm:$0xff]
    %v406 = vld [vmem:[%s3 + $0x70] sm:$0xff]
    %v407 = vld [vmem:[%s3 + $0x78] sm:$0xff]
    %v408 = vld [vmem:[#allocation2] sm:$0xff]
    %v409 = vld [vmem:[#allocation2 + $0x8] sm:$0xff]
    %v410 = vld [vmem:[#allocation2 + $0x10] sm:$0xff]
    %v411 = vld [vmem:[#allocation2 + $0x18] sm:$0xff]
    %v412 = vld [vmem:[#allocation2 + $0x20] sm:$0xff]
    %v413 = vld [vmem:[#allocation2 + $0x28] sm:$0xff]
    %v414 = vld [vmem:[#allocation2 + $0x30] sm:$0xff]
    %v415 = vld [vmem:[#allocation2 + $0x38] sm:$0xff]
    %v416 = vld [vmem:[#allocation2 + $0x40] sm:$0xff]
    %v417 = vld [vmem:[#allocation2 + $0x48] sm:$0xff]
    %v418 = vld [vmem:[#allocation2 + $0x50] sm:$0xff]
    %v419 = vld [vmem:[#allocation2 + $0x58] sm:$0xff]
    %v420 = vld [vmem:[#allocation2 + $0x60] sm:$0xff]
    %v421 = vld [vmem:[#allocation2 + $0x68] sm:$0xff]
    %v422 = vld [vmem:[#allocation2 + $0x70] sm:$0xff]
    %v423 = vld [vmem:[#allocation2 + $0x78] sm:$0xff]
    %425 = vset.pattern.permute.xlu0 0
    %426 = vperm.xlu0 %425, %v392
    %v427 = vpop.permute.xlu0 %426
    %430 = vset.pattern.permute.xlu0 0
    %431 = vperm.xlu0 %430, %v393
    %v432 = vpop.permute.xlu0 %431
    %435 = vset.pattern.permute.xlu0 0
    %436 = vperm.xlu0 %435, %v394
    %v437 = vpop.permute.xlu0 %436
    %440 = vset.pattern.permute.xlu0 0
    %441 = vperm.xlu0 %440, %v395
    %v442 = vpop.permute.xlu0 %441
    %445 = vset.pattern.permute.xlu0 0
    %446 = vperm.xlu0 %445, %v396
    %v447 = vpop.permute.xlu0 %446
    %450 = vset.pattern.permute.xlu0 0
    %451 = vperm.xlu0 %450, %v397
    %v452 = vpop.permute.xlu0 %451
    %455 = vset.pattern.permute.xlu0 0
    %456 = vperm.xlu0 %455, %v398
    %v457 = vpop.permute.xlu0 %456
    %460 = vset.pattern.permute.xlu0 0
    %461 = vperm.xlu0 %460, %v399
    %v462 = vpop.permute.xlu0 %461
    %465 = vset.pattern.permute.xlu0 0
    %466 = vperm.xlu0 %465, %v400
    %v467 = vpop.permute.xlu0 %466
    %470 = vset.pattern.permute.xlu0 0
    %471 = vperm.xlu0 %470, %v401
    %v472 = vpop.permute.xlu0 %471
    %475 = vset.pattern.permute.xlu0 0
    %476 = vperm.xlu0 %475, %v402
    %v477 = vpop.permute.xlu0 %476
    %480 = vset.pattern.permute.xlu0 0
    %481 = vperm.xlu0 %480, %v403
    %v482 = vpop.permute.xlu0 %481
    %485 = vset.pattern.permute.xlu0 0
    %486 = vperm.xlu0 %485, %v404
    %v487 = vpop.permute.xlu0 %486
    %490 = vset.pattern.permute.xlu0 0
    %491 = vperm.xlu0 %490, %v405
    %v492 = vpop.permute.xlu0 %491
    %495 = vset.pattern.permute.xlu0 0
    %496 = vperm.xlu0 %495, %v406
    %v497 = vpop.permute.xlu0 %496
    %500 = vset.pattern.permute.xlu0 0
    %501 = vperm.xlu0 %500, %v407
    %v502 = vpop.permute.xlu0 %501
    %v504 = vmul.f32 %v427, %v408
    %v505 = vmul.f32 %v432, %v409
    %v506 = vmul.f32 %v437, %v410
    %v507 = vmul.f32 %v442, %v411
    %v508 = vmul.f32 %v447, %v412
    %v509 = vmul.f32 %v452, %v413
    %v510 = vmul.f32 %v457, %v414
    %v511 = vmul.f32 %v462, %v415
    %v512 = vmul.f32 %v467, %v416
    %v513 = vmul.f32 %v472, %v417
    %v514 = vmul.f32 %v477, %v418
    %v515 = vmul.f32 %v482, %v419
    %v516 = vmul.f32 %v487, %v420
    %v517 = vmul.f32 %v492, %v421
    %v518 = vmul.f32 %v497, %v422
    %v519 = vmul.f32 %v502, %v423
    %v520 = vld [vmem:[%s4] sm:$0xff]
    %v521 = vld [vmem:[%s4 + $0x8] sm:$0xff]
    %v522 = vld [vmem:[%s4 + $0x10] sm:$0xff]
    %v523 = vld [vmem:[%s4 + $0x18] sm:$0xff]
    %v524 = vld [vmem:[%s4 + $0x20] sm:$0xff]
    %v525 = vld [vmem:[%s4 + $0x28] sm:$0xff]
    %v526 = vld [vmem:[%s4 + $0x30] sm:$0xff]
    %v527 = vld [vmem:[%s4 + $0x38] sm:$0xff]
    %v528 = vld [vmem:[%s4 + $0x40] sm:$0xff]
    %v529 = vld [vmem:[%s4 + $0x48] sm:$0xff]
    %v530 = vld [vmem:[%s4 + $0x50] sm:$0xff]
    %v531 = vld [vmem:[%s4 + $0x58] sm:$0xff]
    %v532 = vld [vmem:[%s4 + $0x60] sm:$0xff]
    %v533 = vld [vmem:[%s4 + $0x68] sm:$0xff]
    %v534 = vld [vmem:[%s4 + $0x70] sm:$0xff]
    %v535 = vld [vmem:[%s4 + $0x78] sm:$0xff]
    %v536 = vld [vmem:[%s5] sm:$0x1]
    %v538 = vlaneseq
    %v539 = vshrl.u32 %v538, 7
    %v540 = vsub.s32 0, %v539
    %v541 = vrot.slane %v536, %v540
    %543 = vmatprep.subr.mxu0 0.0
    %544 = vmatpush1.msra.mxu0 %v520
    %545 = vmatprep.subr.mxu0 0.0
    %546 = vmatpush1.msra.mxu0 %v521
    %547 = vmatprep.subr.mxu0 0.0
    %548 = vmatpush1.msra.mxu0 %v522
    %549 = vmatprep.subr.mxu0 0.0
    %550 = vmatpush1.msra.mxu0 %v523
    %551 = vmatprep.subr.mxu0 0.0
    %552 = vmatpush1.msra.mxu0 %v524
    %553 = vmatprep.subr.mxu0 0.0
    %554 = vmatpush1.msra.mxu0 %v525
    %555 = vmatprep.subr.mxu0 0.0
    %556 = vmatpush1.msra.mxu0 %v526
    %557 = vmatprep.subr.mxu0 0.0
    %558 = vmatpush1.msra.mxu0 %v527
    %559 = vmatprep.subr.mxu0 0.0
    %560 = vmatpush1.msra.mxu0 %v528
    %561 = vmatprep.subr.mxu0 0.0
    %562 = vmatpush1.msra.mxu0 %v529
    %563 = vmatprep.subr.mxu0 0.0
    %564 = vmatpush1.msra.mxu0 %v530
    %565 = vmatprep.subr.mxu0 0.0
    %566 = vmatpush1.msra.mxu0 %v531
    %567 = vmatprep.subr.mxu0 0.0
    %568 = vmatpush1.msra.mxu0 %v532
    %569 = vmatprep.subr.mxu0 0.0
    %570 = vmatpush1.msra.mxu0 %v533
    %571 = vmatprep.subr.mxu0 0.0
    %572 = vmatpush1.msra.mxu0 %v534
    %573 = vmatprep.subr.mxu0 0.0
    %574 = vmatpush1.msra.mxu0 %v535
    %575 = vmatprep.subr.mxu0 0.0
    %576 = vmatpush1.msra.mxu0 0.0
    %577 = vmatprep.subr.mxu0 0.0
    %578 = vmatpush1.msra.mxu0 0.0
    %579 = vmatprep.subr.mxu0 0.0
    %580 = vmatpush1.msra.mxu0 0.0
    %581 = vmatprep.subr.mxu0 0.0
    %582 = vmatpush1.msra.mxu0 0.0
    %583 = vmatprep.subr.mxu0 0.0
    %584 = vmatpush1.msra.mxu0 0.0
    %585 = vmatprep.subr.mxu0 0.0
    %586 = vmatpush1.msra.mxu0 0.0
    %587 = vmatprep.subr.mxu0 0.0
    %588 = vmatpush1.msra.mxu0 0.0
    %589 = vmatprep.subr.mxu0 0.0
    %590 = vmatpush1.msra.mxu0 0.0
    %591 = vmatprep.subr.mxu0 0.0
    %592 = vmatpush1.msra.mxu0 0.0
    %593 = vmatprep.subr.mxu0 0.0
    %594 = vmatpush1.msra.mxu0 0.0
    %595 = vmatprep.subr.mxu0 0.0
    %596 = vmatpush1.msra.mxu0 0.0
    %597 = vmatprep.subr.mxu0 0.0
    %598 = vmatpush1.msra.mxu0 0.0
    %599 = vmatprep.subr.mxu0 0.0
    %600 = vmatpush1.msra.mxu0 0.0
    %601 = vmatprep.subr.mxu0 0.0
    %602 = vmatpush1.msra.mxu0 0.0
    %603 = vmatprep.subr.mxu0 0.0
    %604 = vmatpush1.msra.mxu0 0.0
    %605 = vmatprep.subr.mxu0 0.0
    %606 = vmatpush1.msra.mxu0 0.0
    %607 = vmatprep.mubr.f32.mxu0 0.0
    %608 = vmatmul.mubr.f32.gmra.mrb[0].mxu0 %v504
    %v609 = vpop.f32.mrb[0].mxu0
    %v610 = vadd.f32 %v541, %v609
    %v611 = vpop.f32.mrb[0].mxu0
    %612 = vmatprep.mubr.f32.mxu0 0.0
    %613 = vmatmul.mubr.f32.gmra.mrb[0].mxu0 %v505
    %v614 = vpop.f32.mrb[0].mxu0
    %v615 = vadd.f32 %v541, %v614
    %v616 = vpop.f32.mrb[0].mxu0
    %617 = vmatprep.mubr.f32.mxu0 0.0
    %618 = vmatmul.mubr.f32.gmra.mrb[0].mxu0 %v506
    %v619 = vpop.f32.mrb[0].mxu0
    %v620 = vadd.f32 %v541, %v619
    %v621 = vpop.f32.mrb[0].mxu0
    %622 = vmatprep.mubr.f32.mxu0 0.0
    %623 = vmatmul.mubr.f32.gmra.mrb[0].mxu0 %v507
    %v624 = vpop.f32.mrb[0].mxu0
    %v625 = vadd.f32 %v541, %v624
    %v626 = vpop.f32.mrb[0].mxu0
    %627 = vmatprep.mubr.f32.mxu0 0.0
    %628 = vmatmul.mubr.f32.gmra.mrb[0].mxu0 %v508
    %v629 = vpop.f32.mrb[0].mxu0
    %v630 = vadd.f32 %v541, %v629
    %v631 = vpop.f32.mrb[0].mxu0
    %632 = vmatprep.mubr.f32.mxu0 0.0
    %633 = vmatmul.mubr.f32.gmra.mrb[0].mxu0 %v509
    %v634 = vpop.f32.mrb[0].mxu0
    %v635 = vadd.f32 %v541, %v634
    %v636 = vpop.f32.mrb[0].mxu0
    %637 = vmatprep.mubr.f32.mxu0 0.0
    %638 = vmatmul.mubr.f32.gmra.mrb[0].mxu0 %v510
    %v639 = vpop.f32.mrb[0].mxu0
    %v640 = vadd.f32 %v541, %v639
    %v641 = vpop.f32.mrb[0].mxu0
    %642 = vmatprep.mubr.f32.mxu0 0.0
    %643 = vmatmul.mubr.f32.gmra.mrb[0].mxu0 %v511
    %v644 = vpop.f32.mrb[0].mxu0
    %v645 = vadd.f32 %v541, %v644
    %v646 = vpop.f32.mrb[0].mxu0
    %647 = vmatprep.mubr.f32.mxu0 0.0
    %648 = vmatmul.mubr.f32.gmra.mrb[0].mxu0 %v512
    %v649 = vpop.f32.mrb[0].mxu0
    %v650 = vadd.f32 %v541, %v649
    %v651 = vpop.f32.mrb[0].mxu0
    %652 = vmatprep.mubr.f32.mxu0 0.0
    %653 = vmatmul.mubr.f32.gmra.mrb[0].mxu0 %v513
    %v654 = vpop.f32.mrb[0].mxu0
    %v655 = vadd.f32 %v541, %v654
    %v656 = vpop.f32.mrb[0].mxu0
    %657 = vmatprep.mubr.f32.mxu0 0.0
    %658 = vmatmul.mubr.f32.gmra.mrb[0].mxu0 %v514
    %v659 = vpop.f32.mrb[0].mxu0
    %v660 = vadd.f32 %v541, %v659
    %v661 = vpop.f32.mrb[0].mxu0
    %662 = vmatprep.mubr.f32.mxu0 0.0
    %663 = vmatmul.mubr.f32.gmra.mrb[0].mxu0 %v515
    %v664 = vpop.f32.mrb[0].mxu0
    %v665 = vadd.f32 %v541, %v664
    %v666 = vpop.f32.mrb[0].mxu0
    %667 = vmatprep.mubr.f32.mxu0 0.0
    %668 = vmatmul.mubr.f32.gmra.mrb[0].mxu0 %v516
    %v669 = vpop.f32.mrb[0].mxu0
    %v670 = vadd.f32 %v541, %v669
    %v671 = vpop.f32.mrb[0].mxu0
    %672 = vmatprep.mubr.f32.mxu0 0.0
    %673 = vmatmul.mubr.f32.gmra.mrb[0].mxu0 %v517
    %v674 = vpop.f32.mrb[0].mxu0
    %v675 = vadd.f32 %v541, %v674
    %v676 = vpop.f32.mrb[0].mxu0
    %677 = vmatprep.mubr.f32.mxu0 0.0
    %678 = vmatmul.mubr.f32.gmra.mrb[0].mxu0 %v518
    %v679 = vpop.f32.mrb[0].mxu0
    %v680 = vadd.f32 %v541, %v679
    %v681 = vpop.f32.mrb[0].mxu0
    %682 = vmatprep.mubr.f32.mxu0 0.0
    %683 = vmatmul.mubr.f32.gmra.mrb[0].mxu0 %v519
    %v684 = vpop.f32.mrb[0].mxu0
    %v685 = vadd.f32 %v541, %v684
    %v686 = vpop.f32.mrb[0].mxu0
    %687 = vdwg.mxu0
    %v688 = vmax.f32 %v610, 0.0
    %v689 = vmax.f32 %v615, 0.0
    %v690 = vmax.f32 %v620, 0.0
    %v691 = vmax.f32 %v625, 0.0
    %v692 = vmax.f32 %v630, 0.0
    %v693 = vmax.f32 %v635, 0.0
    %v694 = vmax.f32 %v640, 0.0
    %v695 = vmax.f32 %v645, 0.0
    %v696 = vmax.f32 %v650, 0.0
    %v697 = vmax.f32 %v655, 0.0
    %v698 = vmax.f32 %v660, 0.0
    %v699 = vmax.f32 %v665, 0.0
    %v700 = vmax.f32 %v670, 0.0
    %v701 = vmax.f32 %v675, 0.0
    %v702 = vmax.f32 %v680, 0.0
    %v703 = vmax.f32 %v685, 0.0
    %704 = vst [vmem:[%s6] sm:$0xff] %v688
    %705 = vst [vmem:[%s6 + $0x8] sm:$0xff] %v689
    %706 = vst [vmem:[%s6 + $0x10] sm:$0xff] %v690
    %707 = vst [vmem:[%s6 + $0x18] sm:$0xff] %v691
    %708 = vst [vmem:[%s6 + $0x20] sm:$0xff] %v692
    %709 = vst [vmem:[%s6 + $0x28] sm:$0xff] %v693
    %710 = vst [vmem:[%s6 + $0x30] sm:$0xff] %v694
    %711 = vst [vmem:[%s6 + $0x38] sm:$0xff] %v695
    %712 = vst [vmem:[%s6 + $0x40] sm:$0xff] %v696
    %713 = vst [vmem:[%s6 + $0x48] sm:$0xff] %v697
    %714 = vst [vmem:[%s6 + $0x50] sm:$0xff] %v698
    %715 = vst [vmem:[%s6 + $0x58] sm:$0xff] %v699
    %716 = vst [vmem:[%s6 + $0x60] sm:$0xff] %v700
    %717 = vst [vmem:[%s6 + $0x68] sm:$0xff] %v701
    %718 = vst [vmem:[%s6 + $0x70] sm:$0xff] %v702
    %719 = vst [vmem:[%s6 + $0x78] sm:$0xff] %v703
  $region33: #{graph_convolution.1} parent=0 // pred_fallthru
    _
  // Predicated region
  $region34: #{graph_convolution.1} parent=0 // pred_check
    _
  $region35: #{graph_convolution.1} parent=0 // pred_check_branch
    %721 = sbr.rel (0) target = $region37
  $region36: #{graph_convolution.1} parent=0 // pred_region
    _
  $region37: #{graph_convolution.1} parent=0 // pred_fallthru
    _
  // Predicated region
  $region38: #{graph_convolution.1} parent=0 // pred_check
    _
  $region39: #{graph_convolution.1} parent=0 // pred_check_branch
    %723 = sbr.rel (0) target = $region41
  $region40: #{graph_convolution.1} parent=0 // pred_region
    _
  $region41: #{graph_convolution.1} parent=0 // pred_fallthru
    _

</llo_original>
